<compile_context>
chip_gen: v7x
topology: tpu7x:2x2x1
jax: 0.10.0
libtpu: 0.0.40
codegen_flags: <defaults>
</compile_context>

<pallas_src>
import jax
import jax.numpy as jnp
from jax.experimental import pallas as pl
from jax.experimental.pallas import tpu as pltpu


def _round_up(n, m):
    return ((n + m - 1) // m) * m


def _link_pred_kernel(x_src_ref, x_dst_ref, wt_ref, bt_ref, o_ref):
    # Hadamard product in bf16 (native VALU on v6e/v7x; Mosaic widens on v5e).
    h = x_src_ref[...] * x_dst_ref[...]                        # [TE, F] bf16

    # logits^T = W^T @ h^T, expressed as A @ B^T (contract both last dims) —
    # the same NT contraction flash-attention uses for q @ k^T.  bf16 operands,
    # f32 accumulation on the MXU; result is already lane-dense along edges.
    logits_t = jax.lax.dot_general(
        wt_ref[...], h,
        dimension_numbers=(((1,), (1,)), ((), ())),
        preferred_element_type=jnp.float32)                    # [T8, TE] f32

    logits_t = logits_t + bt_ref[...]                          # [T8, 1] bcast
    o_ref[...] = jax.nn.sigmoid(logits_t)                      # EUP, T8 rows only


def link_predictor_forward(x, edge_index, batch, W, b, *, edge_tile=8192):
    """x: [N, F] f32, edge_index: [2, E] i32, batch: [N] i32 (unused),
    W: [F, T] f32, b: [T] f32  ->  [E, T] f32 edge scores."""
    del batch  # graph-assignment vector is not used by the per-edge score head

    N, F = x.shape
    T = W.shape[1]
    E = edge_index.shape[1]

    # --- wrapper-side layout plumbing -------------------------------------
    # bf16 node features -> gather moves half the bytes.
    x_bf = x.astype(jnp.bfloat16)
    src, dst = edge_index[0], edge_index[1]
    x_src = jnp.take(x_bf, src, axis=0)                        # [E, F] bf16
    x_dst = jnp.take(x_bf, dst, axis=0)                        # [E, F] bf16

    # Pad E only to a small quantum (decoupled from the tile size); the grid
    # uses pl.cdiv so the last tile may be ragged (Pallas masks the overhang).
    QUANT = 128
    E_pad = _round_up(E, QUANT)
    if E_pad != E:
        pad = E_pad - E
        x_src = jnp.pad(x_src, ((0, pad), (0, 0)))
        x_dst = jnp.pad(x_dst, ((0, pad), (0, 0)))

    # edge_tile and QUANT are both multiples of 128 -> TE is a valid
    # sublane block (inputs) and lane block (transposed output).
    TE = min(edge_tile, E_pad)
    n_tiles = pl.cdiv(E_pad, TE)
    # Note (v7x): for very large edge_tile and modest E this may give a 1-tile
    # grid (one TensorCore idle); sweep edge_tile per platform if that matters.

    # Transposed weights/bias, padded to 8 sublanes (T8 rows, T real ones).
    T8 = _round_up(T, 8)
    Wt = jnp.pad(W.T.astype(jnp.bfloat16), ((0, T8 - T), (0, 0)))   # [T8, F]
    bt = jnp.pad(b.astype(jnp.float32), (0, T8 - T)).reshape(T8, 1)  # [T8, 1]

    cost = pl.CostEstimate(
        flops=2 * E_pad * F * T8 + E_pad * F,     # matmul + Hadamard
        transcendentals=E_pad * T8,               # sigmoid
        bytes_accessed=(2 * E_pad * F * 2         # bf16 src/dst streams
                        + T8 * F * 2              # bf16 W^T (resident)
                        + T8 * 4                  # bias
                        + E_pad * T8 * 4),        # f32 transposed output
    )

    out_t = pl.pallas_call(
        _link_pred_kernel,
        out_shape=jax.ShapeDtypeStruct((T8, E_pad), jnp.float32),
        grid=(n_tiles,),
        in_specs=[
            pl.BlockSpec((TE, F), lambda i: (i, 0)),       # x_src tile
            pl.BlockSpec((TE, F), lambda i: (i, 0)),       # x_dst tile
            pl.BlockSpec((T8, F), lambda i: (0, 0)),       # W^T (resident)
            pl.BlockSpec((T8, 1), lambda i: (0, 0)),       # b   (resident)
        ],
        out_specs=pl.BlockSpec((T8, TE), lambda i: (0, i)),
        compiler_params=pltpu.CompilerParams(
            dimension_semantics=("parallel",)),
        cost_estimate=cost,
    )(x_src, x_dst, Wt, bt)

    # Slice off padded target rows / edge columns and restore [E, T] layout.
    return out_t[:T, :E].T


if __name__ == "__main__":
    # Module config-implied sizes (small, deterministic).
    dim_node_features = 32
    dim_edge_features = 8   # unused by the score head
    dim_target = 4
    num_nodes = 16
    num_edges = 8

    key = jax.random.PRNGKey(0)
    kx, ke, kw, kb = jax.random.split(key, 4)

    x = jax.random.normal(kx, (num_nodes, dim_node_features), dtype=jnp.float32)
    edge_index = jax.random.randint(ke, (2, num_edges), 0, num_nodes,
                                    dtype=jnp.int32)
    batch = jnp.zeros((num_nodes,), dtype=jnp.int32)

    # Deterministic parameter init (synthetic; no checkpoint load).
    W = (jax.random.normal(kw, (dim_node_features, dim_target), jnp.float32)
         * (1.0 / jnp.sqrt(dim_node_features)))
    b = jax.random.normal(kb, (dim_target,), jnp.float32) * 0.01

    out = link_predictor_forward(x, edge_index, batch, W, b)
    out = jax.block_until_ready(out)

    # Sanity check against pure-f32 JAX reference (kernel inputs are bf16,
    # so allow bf16-level tolerance on the bounded sigmoid output).
    ref = jax.nn.sigmoid(
        (x[edge_index[0]] * x[edge_index[1]]) @ W + b[None, :])
    assert out.shape == (num_edges, dim_target)
    assert jnp.allclose(out, ref, atol=2e-2, rtol=2e-2)

    print("KERNEL_OK")
</pallas_src>

<mosaic_0001>
module attributes {stable_mosaic.version = 11 : i64} {
  func.func @_link_pred_kernel(%arg0: i32, %arg1: memref<128x32xbf16, #tpu.memory_space<vmem>>, %arg2: memref<128x32xbf16, #tpu.memory_space<vmem>>, %arg3: memref<8x32xbf16, #tpu.memory_space<vmem>>, %arg4: memref<8x1xf32, #tpu.memory_space<vmem>>, %arg5: memref<8x128xf32, #tpu.memory_space<vmem>>) attributes {dimension_semantics = [#tpu.dimension_semantics<parallel>], iteration_bounds = array<i64: 1>, scalar_prefetch = 0 : i64, scratch_operands = 0 : i64, tpu.core_type = #tpu.core_type<tc>, window_params = [{transform_indices = @transform_0, window_bounds = array<i64: 128, 32>}, {transform_indices = @transform_1, window_bounds = array<i64: 128, 32>}, {pipeline_mode = #tpu.pipeline_mode<synchronous>, transform_indices = @transform_2, window_bounds = array<i64: 8, 32>}, {pipeline_mode = #tpu.pipeline_mode<synchronous>, transform_indices = @transform_3, window_bounds = array<i64: 8, 1>}, {transform_indices = @transform_4, window_bounds = array<i64: 8, 128>}]} {
    %c0 = arith.constant 0 : index
    %c0_0 = arith.constant 0 : index
    %0 = vector.load %arg1[%c0, %c0_0] : memref<128x32xbf16, #tpu.memory_space<vmem>>, vector<128x32xbf16>
    %c0_1 = arith.constant 0 : index
    %c0_2 = arith.constant 0 : index
    %1 = vector.load %arg2[%c0_1, %c0_2] : memref<128x32xbf16, #tpu.memory_space<vmem>>, vector<128x32xbf16>
    %2 = arith.mulf %0, %1 : vector<128x32xbf16>
    %c0_3 = arith.constant 0 : index
    %c0_4 = arith.constant 0 : index
    %3 = vector.load %arg3[%c0_3, %c0_4] : memref<8x32xbf16, #tpu.memory_space<vmem>>, vector<8x32xbf16>
    %cst = arith.constant dense<0.000000e+00> : vector<8x128xf32>
    %4 = tpu.matmul %3, %2, %cst {dimension_numbers = #tpu.dot_dimension_numbers<[1], [1], [0], [0], [0, 0, 1, 0], [], []>} : vector<8x32xbf16>, vector<128x32xbf16>, vector<8x128xf32> -> vector<8x128xf32>
    %c0_5 = arith.constant 0 : index
    %c0_6 = arith.constant 0 : index
    %5 = vector.load %arg4[%c0_5, %c0_6] : memref<8x1xf32, #tpu.memory_space<vmem>>, vector<8x1xf32>
    %6 = vector.broadcast %5 : vector<8x1xf32> to vector<8x128xf32>
    %7 = arith.addf %4, %6 : vector<8x128xf32>
    %8 = arith.negf %7 : vector<8x128xf32>
    %9 = math.exp %8 : vector<8x128xf32>
    %cst_7 = arith.constant 1.000000e+00 : f32
    %10 = vector.broadcast %cst_7 : f32 to vector<8x128xf32>
    %11 = arith.addf %10, %9 : vector<8x128xf32>
    %12 = arith.divf %10, %11 : vector<8x128xf32>
    %c0_8 = arith.constant 0 : index
    %c0_9 = arith.constant 0 : index
    %13 = vector.load %arg5[%c0_8, %c0_9] : memref<8x128xf32, #tpu.memory_space<vmem>>, vector<8x128xf32>
    tpu.vector_store %arg5[%c0_8, %c0_9], %12 {strides = array<i32>} : memref<8x128xf32, #tpu.memory_space<vmem>>, vector<8x128xf32>,
    return
  }
  func.func @transform_0(%arg0: i32) -> (i32, i32) {
    %c0_i32 = arith.constant 0 : i32
    %c0_i32_0 = arith.constant 0 : i32
    return %arg0, %c0_i32 : i32, i32
  }
  func.func @transform_1(%arg0: i32) -> (i32, i32) {
    %c0_i32 = arith.constant 0 : i32
    %c0_i32_0 = arith.constant 0 : i32
    return %arg0, %c0_i32 : i32, i32
  }
  func.func @transform_2(%arg0: i32) -> (i32, i32) {
    %c0_i32 = arith.constant 0 : i32
    %c0_i32_0 = arith.constant 0 : i32
    %c0_i32_1 = arith.constant 0 : i32
    return %c0_i32, %c0_i32_0 : i32, i32
  }
  func.func @transform_3(%arg0: i32) -> (i32, i32) {
    %c0_i32 = arith.constant 0 : i32
    %c0_i32_0 = arith.constant 0 : i32
    %c0_i32_1 = arith.constant 0 : i32
    return %c0_i32, %c0_i32_0 : i32, i32
  }
  func.func @transform_4(%arg0: i32) -> (i32, i32) {
    %c0_i32 = arith.constant 0 : i32
    %c0_i32_0 = arith.constant 0 : i32
    return %c0_i32, %arg0 : i32, i32
  }
}

</mosaic_0001>

<llo_original>
// kernel: tpu_custom_call.1
$region0: #{tpu_custom_call.1}
  #allocation0 [shape = 'u32[]', space=smem, size = 0x4, offset = 0x4, fixed_abs, tag = 'smem constant byte address 0x4 - core index']
  #allocation1 [shape = 'u32[144,128]{1,0:T(1,128)}', space=vmem, size = 0x12000, scoped, tag = 'internal scratch']
  %s0 = inlined_call_operand.vmem [shape: bf16[128,32], index: 0, kind: input, shape index: {}]
  %s1 = inlined_call_operand.vmem [shape: bf16[128,32], index: 1, kind: input, shape index: {}]
  %s2 = inlined_call_operand.vmem [shape: bf16[8,32], index: 2, kind: input, shape index: {}]
  %s3 = inlined_call_operand.vmem [shape: f32[8,1], index: 3, kind: input, shape index: {}]
  %s4 = inlined_call_operand.hbm [shape: f32[8,128], index: 4, kind: output, shape index: {}]
  %s5 = sld [smem:[#allocation0]]
  $region26: #{tpu_custom_call.1} parent=0
    _
  %s7 = ssub.s32 1, %s5
  %s8 = scalar_select 0, %s7, %s5
  $region1: #{tpu_custom_call.1} parent=0
    #allocation2 [shape = 'u8[4096]{0}', space=vmem, size = 0x1000, scoped, tag = 'output window, operand 0, single buffered']
    #allocation3 [shape = 's32[1]{0}', space=sflag, size = 0x4, scoped, tag = 'scoped memory for tpu_custom_call.1']
    %9 = vsyncpa [#allocation3], 0
    // Predicated region
    $region2: #{tpu_custom_call.1} parent=1 // pred_check
      _
    $region3: #{tpu_custom_call.1} parent=1 // pred_check_branch
      %11 = sbr.rel (0) target = $region5
    $region4: #{tpu_custom_call.1} parent=1 // pred_region
      _
    $region5: #{tpu_custom_call.1} parent=1 // pred_fallthru
      _
    // Predicated region
    $region6: #{tpu_custom_call.1} parent=1 // pred_check
      _
    $region7: #{tpu_custom_call.1} parent=1 // pred_check_branch
      %13 = sbr.rel (0) target = $region9
    $region8: #{tpu_custom_call.1} parent=1 // pred_region
      _
    $region9: #{tpu_custom_call.1} parent=1 // pred_fallthru
      _
    // Predicated region
    $region10: #{tpu_custom_call.1} parent=1 // pred_check
      _
    $region11: #{tpu_custom_call.1} parent=1 // pred_check_branch
      %15 = sbr.rel (0) target = $region13
    $region12: #{tpu_custom_call.1} parent=1 // pred_region
      _
    $region13: #{tpu_custom_call.1} parent=1 // pred_fallthru
      _
    // Predicated region
    $region14: #{tpu_custom_call.1} parent=1 // pred_check
      _
    $region15: #{tpu_custom_call.1} parent=1 // pred_check_branch
      %17 = sbr.rel (0) target = $region17
    $region16: #{tpu_custom_call.1} parent=1 // pred_region
      _
    $region17: #{tpu_custom_call.1} parent=1 // pred_fallthru
      _
    %v19 = vld [vmem:[%s0] sm:$0xf]
    %v20 = vld [vmem:[%s0 + $0x4] sm:$0xf]
    %v21 = vld [vmem:[%s0 + $0x8] sm:$0xf]
    %v22 = vld [vmem:[%s0 + $0xc] sm:$0xf]
    %v23 = vld [vmem:[%s0 + $0x10] sm:$0xf]
    %v24 = vld [vmem:[%s0 + $0x14] sm:$0xf]
    %v25 = vld [vmem:[%s0 + $0x18] sm:$0xf]
    %v26 = vld [vmem:[%s0 + $0x1c] sm:$0xf]
    %v27 = vld [vmem:[%s0 + $0x20] sm:$0xf]
    %v28 = vld [vmem:[%s0 + $0x24] sm:$0xf]
    %v29 = vld [vmem:[%s0 + $0x28] sm:$0xf]
    %v30 = vld [vmem:[%s0 + $0x2c] sm:$0xf]
    %v31 = vld [vmem:[%s0 + $0x30] sm:$0xf]
    %v32 = vld [vmem:[%s0 + $0x34] sm:$0xf]
    %v33 = vld [vmem:[%s0 + $0x38] sm:$0xf]
    %v34 = vld [vmem:[%s0 + $0x3c] sm:$0xf]
    %v35 = vld [vmem:[%s1] sm:$0xf]
    %v36 = vld [vmem:[%s1 + $0x4] sm:$0xf]
    %v37 = vld [vmem:[%s1 + $0x8] sm:$0xf]
    %v38 = vld [vmem:[%s1 + $0xc] sm:$0xf]
    %v39 = vld [vmem:[%s1 + $0x10] sm:$0xf]
    %v40 = vld [vmem:[%s1 + $0x14] sm:$0xf]
    %v41 = vld [vmem:[%s1 + $0x18] sm:$0xf]
    %v42 = vld [vmem:[%s1 + $0x1c] sm:$0xf]
    %v43 = vld [vmem:[%s1 + $0x20] sm:$0xf]
    %v44 = vld [vmem:[%s1 + $0x24] sm:$0xf]
    %v45 = vld [vmem:[%s1 + $0x28] sm:$0xf]
    %v46 = vld [vmem:[%s1 + $0x2c] sm:$0xf]
    %v47 = vld [vmem:[%s1 + $0x30] sm:$0xf]
    %v48 = vld [vmem:[%s1 + $0x34] sm:$0xf]
    %v49 = vld [vmem:[%s1 + $0x38] sm:$0xf]
    %v50 = vld [vmem:[%s1 + $0x3c] sm:$0xf]
    %v51 = vmul.bf16 %v19, %v35
    %v52 = vmul.bf16 %v20, %v36
    %v53 = vmul.bf16 %v21, %v37
    %v54 = vmul.bf16 %v22, %v38
    %v55 = vmul.bf16 %v23, %v39
    %v56 = vmul.bf16 %v24, %v40
    %v57 = vmul.bf16 %v25, %v41
    %v58 = vmul.bf16 %v26, %v42
    %v59 = vmul.bf16 %v27, %v43
    %v60 = vmul.bf16 %v28, %v44
    %v61 = vmul.bf16 %v29, %v45
    %v62 = vmul.bf16 %v30, %v46
    %v63 = vmul.bf16 %v31, %v47
    %v64 = vmul.bf16 %v32, %v48
    %v65 = vmul.bf16 %v33, %v49
    %v66 = vmul.bf16 %v34, %v50
    %v67 = vld [vmem:[%s2] sm:$0xf]
    %v68 = vld [vmem:[%s3] sm:$0xff]
    %70 = vset.pattern.permute.xlu0 0
    %71 = vperm.xlu0 %70, %v68
    %v72 = vpop.permute.xlu0 %71
    %v90 = vunpack.c.l.b16 %v51
    %v91 = vunpack.c.l.b16 %v52
    %v92 = vunpack.c.l.b16 %v53
    %v93 = vunpack.c.l.b16 %v54
    %v94 = vunpack.c.l.b16 %v55
    %v95 = vunpack.c.l.b16 %v56
    %v96 = vunpack.c.l.b16 %v57
    %v97 = vunpack.c.l.b16 %v58
    %v98 = vunpack.c.l.b16 %v59
    %v99 = vunpack.c.l.b16 %v60
    %v100 = vunpack.c.l.b16 %v61
    %v101 = vunpack.c.l.b16 %v62
    %v102 = vunpack.c.l.b16 %v63
    %v103 = vunpack.c.l.b16 %v64
    %v104 = vunpack.c.l.b16 %v65
    %v105 = vunpack.c.l.b16 %v66
    %v106 = vpack.c.b16 %v91, %v90
    %v107 = vpack.c.b16 %v93, %v92
    %v108 = vpack.c.b16 %v95, %v94
    %v109 = vpack.c.b16 %v97, %v96
    %v110 = vpack.c.b16 %v99, %v98
    %v111 = vpack.c.b16 %v101, %v100
    %v112 = vpack.c.b16 %v103, %v102
    %v113 = vpack.c.b16 %v105, %v104
    %vm114 = vcmask 261120
    %v116 = vsel %vm114, %v67, 0
    %v119 = vsel %vm114, %v106, 0
    %v122 = vsel %vm114, %v107, 0
    %v125 = vsel %vm114, %v108, 0
    %v128 = vsel %vm114, %v109, 0
    %v131 = vsel %vm114, %v110, 0
    %v134 = vsel %vm114, %v111, 0
    %v137 = vsel %vm114, %v112, 0
    %v140 = vsel %vm114, %v113, 0
    %142 = vmatprep.subr.bf16.mxu0 0
    %143 = vmatpush1.bf16.xpose.msra.mxu0 %v119
    %144 = vmatprep.subr.bf16.mxu0 0
    %145 = vmatpush1.bf16.xpose.msra.mxu0 %v122
    %146 = vmatprep.subr.bf16.mxu0 0
    %147 = vmatpush1.bf16.xpose.msra.mxu0 %v125
    %148 = vmatprep.subr.bf16.mxu0 0
    %149 = vmatpush1.bf16.xpose.msra.mxu0 %v128
    %150 = vmatprep.subr.bf16.mxu0 0
    %151 = vmatpush1.bf16.xpose.msra.mxu0 %v131
    %152 = vmatprep.subr.bf16.mxu0 0
    %153 = vmatpush1.bf16.xpose.msra.mxu0 %v134
    %154 = vmatprep.subr.bf16.mxu0 0
    %155 = vmatpush1.bf16.xpose.msra.mxu0 %v137
    %156 = vmatprep.subr.bf16.mxu0 0
    %157 = vmatpush1.bf16.xpose.msra.mxu0 %v140
    %158 = vmatprep.subr.bf16.mxu0 0
    %159 = vmatpush1.bf16.xpose.msra.mxu0 0
    %160 = vmatprep.subr.bf16.mxu0 0
    %161 = vmatpush1.bf16.xpose.msra.mxu0 0
    %162 = vmatprep.subr.bf16.mxu0 0
    %163 = vmatpush1.bf16.xpose.msra.mxu0 0
    %164 = vmatprep.subr.bf16.mxu0 0
    %165 = vmatpush1.bf16.xpose.msra.mxu0 0
    %166 = vmatprep.subr.bf16.mxu0 0
    %167 = vmatpush1.bf16.xpose.msra.mxu0 0
    %168 = vmatprep.subr.bf16.mxu0 0
    %169 = vmatpush1.bf16.xpose.msra.mxu0 0
    %170 = vmatprep.subr.bf16.mxu0 0
    %171 = vmatpush1.bf16.xpose.msra.mxu0 0
    %172 = vmatprep.subr.bf16.mxu0 0
    %173 = vmatpush1.bf16.xpose.msra.mxu0 0
    %174 = vmatprep.mubr.bf16.mxu0 0
    %175 = vmatmul.mubr.bf16.gmra.mrb[0].mxu0 %v116
    %v176 = vpop.f32.mrb[0].mxu0
    %v177 = vadd.f32 %v72, %v176
    %v178 = vpop.f32.mrb[0].mxu0
    %v179 = vpop.f32.mrb[0].mxu0
    %v180 = vpop.f32.mrb[0].mxu0
    %181 = vdwg.mxu0
    %v182 = vxor.u32 %v177, 2147483648
    %v183 = vmul.f32 %v182, 1.442695
    %v184 = vpow.pop %v183
    %v185 = vadd.f32 %v184, 1.0
    %v186 = vrcp.pop %v185
    %v187 = vmul.f32 1.0, %v186
    %188 = vst [vmem:[#allocation2] sm:$0xff] %v187
    // Predicated region
    $region18: #{tpu_custom_call.1} parent=1 // pred_check
      _
    $region19: #{tpu_custom_call.1} parent=1 // pred_check_branch
      %190 = sbr.rel (0) target = $region21
    $region20: #{tpu_custom_call.1} parent=1 // pred_region
      %s192 = ssub.s32 128, 128
      %193 = vsyncadd [#allocation3], %s192
      %s195 = sshll.u32 [#allocation2], 4
      %s196 = int_to_ptr.vmem [resolvable:$true] %s195
      %198 = dma.vmem_to_hbm [thread:$0]  %s196, 128, %s4, [#allocation3]
    $region21: #{tpu_custom_call.1} parent=1 // pred_fallthru
      _
    // Predicated region
    $region22: #{tpu_custom_call.1} parent=1 // pred_check
      _
    $region23: #{tpu_custom_call.1} parent=1 // pred_check_branch
      %200 = sbr.rel (0) target = $region25
    $region24: #{tpu_custom_call.1} parent=1 // pred_region
      %201 = dma.done [#allocation3], 128
    $region25: #{tpu_custom_call.1} parent=1 // pred_fallthru
      _
    %202 = vsyncpa [#allocation3], 1

</llo_original>
